<compile_context>
chip_gen: v7x
topology: tpu7x:2x2x1
jax: 0.10.0
libtpu: 0.0.40
codegen_flags: <defaults>
</compile_context>

<pallas_src>
import functools

import jax
import jax.numpy as jnp
from jax.experimental import pallas as pl
from jax.experimental.pallas import tpu as pltpu


_LANE = 128


def _round_up(x, m):
    return ((x + m - 1) // m) * m


def _pad2(a, rows, cols):
    return jnp.pad(a, ((0, rows - a.shape[0]), (0, cols - a.shape[1])))


def _vmem_limit_bytes():
    """Per-generation scoped VMEM limit: ~75% of physical, capped; safe 32 MiB fallback."""
    try:
        cap = int(pltpu.get_tpu_info().vmem_capacity_bytes)
        return min(100 * 1024 * 1024, max(32 * 1024 * 1024, (cap * 3) // 4))
    except Exception:
        return 32 * 1024 * 1024


# --------------------------------------------------------------------------- kernel -----

def _aggregate_kernel(a_ref, xw_ref, b_ref, o_ref, acc_ref, *, tk, apply_relu):
    """out[i-tile] = A_hat[i-tile, :] @ XW + b   (k-tiled reduction, f32 accumulator).

    a_ref  : (tm, tk)         bf16 normalized-adjacency tile (streamed from HBM)
    xw_ref : (n_pad, 2*Dout)  bf16 projected features, fully VMEM-resident (x-path | pos-path)
    b_ref  : (1, 2*Dout)      f32 bias, duplicated for both paths
    o_ref  : (tm, 2*Dout)     output tile (bf16 intermediate / f32 final)
    acc_ref: (tm, 2*Dout)     f32 VMEM scratch accumulator
    """
    k = pl.program_id(1)

    @pl.when(k == 0)
    def _():
        acc_ref[...] = jnp.zeros_like(acc_ref)

    k_start = pl.multiple_of(k * tk, tk)
    xw_tile = xw_ref[pl.ds(k_start, tk), :]
    acc_ref[...] += jnp.dot(a_ref[...], xw_tile, preferred_element_type=jnp.float32)

    @pl.when(k == pl.num_programs(1) - 1)
    def _():
        r = acc_ref[...] + b_ref[...]
        if apply_relu:
            r = jnp.maximum(r, 0.0)
        o_ref[...] = r.astype(o_ref.dtype)


# --------------------------------------------------------------------------- wrappers ---

def _project(feats_cat, w):
    """[X | P] (n_pad, 2*Din) @ W (Din, Dout) -> (n_pad, 2*Dout) bf16.

    Tiny GEMM: left to XLA per perf review (no MXU advantage from a dedicated Pallas call;
    avoids two extra kernel launches per layer)."""
    din = w.shape[0]
    xw = jnp.dot(feats_cat[:, :din], w, preferred_element_type=jnp.float32)
    pw = jnp.dot(feats_cat[:, din:], w, preferred_element_type=jnp.float32)
    return jnp.concatenate([xw, pw], axis=-1).astype(jnp.bfloat16)


def _aggregate(a_hat, xw, b_cat, *, apply_relu, out_dtype, tm, tk, vmem_limit):
    """A_hat (n_pad, n_pad) @ XW (n_pad, 2*Dout) + b, tiled (row tiles x contraction tiles).

    A_hat tiles are streamed/pipelined; XW is a constant-index full-array block so it is
    DMA'd into VMEM once and reused for every grid step."""
    n_pad = a_hat.shape[0]
    dout2 = xw.shape[1]
    kern = functools.partial(_aggregate_kernel, tk=tk, apply_relu=apply_relu)
    return pl.pallas_call(
        kern,
        out_shape=jax.ShapeDtypeStruct((n_pad, dout2), out_dtype),
        grid=(n_pad // tm, n_pad // tk),
        in_specs=[
            pl.BlockSpec((tm, tk), lambda i, k: (i, k)),          # streamed A_hat tile
            pl.BlockSpec((n_pad, dout2), lambda i, k: (0, 0)),    # XW fully VMEM-resident
            pl.BlockSpec((1, dout2), lambda i, k: (0, 0)),        # bias
        ],
        out_specs=pl.BlockSpec((tm, dout2), lambda i, k: (i, 0)),
        scratch_shapes=[pltpu.VMEM((tm, dout2), jnp.float32)],
        compiler_params=pltpu.CompilerParams(
            # row tiles shard across TensorCores (2x on v7x); k is a reduction -> arbitrary.
            dimension_semantics=("parallel", "arbitrary"),
            vmem_limit_bytes=vmem_limit),
    )(a_hat, xw, b_cat)


def _gcn_layer(a_hat, feats_cat, w, b_cat, *, apply_relu, out_dtype, tm, tk, vmem_limit):
    xw = _project(feats_cat, w)
    return _aggregate(a_hat, xw, b_cat, apply_relu=apply_relu,
                      out_dtype=out_dtype, tm=tm, tk=tk, vmem_limit=vmem_limit)


def build_normalized_adjacency(edge_index, num_nodes, n_pad=None, dtype=jnp.float32):
    """Dense A_hat = D^{-1/2} (A + I) D^{-1/2}, matching torch_geometric gcn_norm.

    edge_index: int array [2, E], row 0 = source, row 1 = target; A stored as [dst, src].
    Degrees come from a cheap 1-D scatter (no dense f32 NxN intermediate); the single dense
    matrix is built directly in `dtype` at the padded size (padded rows/cols are zero).
    """
    if n_pad is None:
        n_pad = num_nodes
    src, dst = edge_index[0], edge_index[1]
    # in-degree with multiplicity + self loop
    deg = jnp.ones((num_nodes,), jnp.float32).at[dst].add(1.0)
    d_inv_sqrt = jnp.where(deg > 0, jax.lax.rsqrt(deg), 0.0)
    w_edge = (d_inv_sqrt[dst] * d_inv_sqrt[src]).astype(dtype)
    a = jnp.zeros((n_pad, n_pad), dtype=dtype)
    a = a.at[dst, src].add(w_edge)                           # duplicate edges accumulate
    idx = jnp.arange(num_nodes)
    a = a.at[idx, idx].add((d_inv_sqrt * d_inv_sqrt).astype(dtype))   # self-loop weights
    return a


def lspe_gcn_forward(x, edge_index, pos_embeddings, params, *, tm=512, tk=512):
    """Full LSPEGCN forward: returns (x_out, pos_out).

    The x-path and pos-path share the GCN weights, so they are fused by concatenating the
    two feature matrices on the lane axis; A_hat is streamed through the MXU once per layer
    while XW stays VMEM-resident.  tm/tk default to 512 (keep them multiples of 128)."""
    assert tm % _LANE == 0 and tk % _LANE == 0, "tm/tk must be multiples of 128"
    w1, b1, w2, b2 = params
    n, f_in = x.shape
    hidden = w1.shape[1]
    n_classes = w2.shape[1]

    # pos_embeddings.view(-1, pos_embeddings.size(2))
    pos_init = pos_embeddings.reshape(-1, pos_embeddings.shape[2])
    assert pos_init.shape == x.shape, "flattened pos_embeddings must match x's shape"

    # ---- pad to lane-dense, tile-divisible shapes (zero padding is exact for GCN) ----
    n_pad0 = _round_up(n, _LANE)
    tm = min(tm, n_pad0)
    # keep >= 2 row tiles when the graph allows, so both v7x TensorCores get work
    if n_pad0 >= 2 * _LANE:
        tm = min(tm, _round_up(n_pad0 // 2, _LANE))
    n_pad = _round_up(n_pad0, tm)
    tk = min(tk, n_pad)
    while n_pad % tk:
        tk -= _LANE          # n_pad is a multiple of 128, so this terminates (worst case 128)

    f_pad = _round_up(f_in, _LANE)
    h_pad = _round_up(hidden, _LANE)
    c_pad = _round_up(n_classes, _LANE)
    vmem_limit = _vmem_limit_bytes()

    # Dense normalized adjacency, built directly in bf16 at padded size (half the HBM bytes).
    a_hat_p = build_normalized_adjacency(edge_index, n, n_pad=n_pad, dtype=jnp.bfloat16)

    x_p = _pad2(x, n_pad, f_pad).astype(jnp.bfloat16)
    p_p = _pad2(pos_init, n_pad, f_pad).astype(jnp.bfloat16)
    feats0 = jnp.concatenate([x_p, p_p], axis=-1)               # (n_pad, 2*f_pad)

    w1_p = _pad2(w1, f_pad, h_pad).astype(jnp.bfloat16)
    w2_p = _pad2(w2, h_pad, c_pad).astype(jnp.bfloat16)
    b1_p = _pad2(b1.reshape(1, -1), 1, h_pad).astype(jnp.float32)
    b2_p = _pad2(b2.reshape(1, -1), 1, c_pad).astype(jnp.float32)
    b1_cat = jnp.concatenate([b1_p, b1_p], axis=-1)             # (1, 2*h_pad)
    b2_cat = jnp.concatenate([b2_p, b2_p], axis=-1)             # (1, 2*c_pad)

    # Layer 1: ReLU(A_hat @ ([X|P] @ W1) + b1), both paths at once.
    h1 = _gcn_layer(a_hat_p, feats0, w1_p, b1_cat, apply_relu=True,
                    out_dtype=jnp.bfloat16, tm=tm, tk=tk, vmem_limit=vmem_limit)
    # Layer 2: A_hat @ ([Hx|Hp] @ W2) + b2, f32 output.
    out = _gcn_layer(a_hat_p, h1, w2_p, b2_cat, apply_relu=False,
                     out_dtype=jnp.float32, tm=tm, tk=tk, vmem_limit=vmem_limit)

    # Split the fused lane-dense output back into the two results (free layout plumbing).
    x_out = out[:n, :n_classes]
    pos_out = out[:n, c_pad:c_pad + n_classes]
    return x_out, pos_out


if __name__ == "__main__":
    # Small deterministic problem: N nodes, num_features=8, hidden=8, num_classes=4.
    # N=160 pads to 256; tm=tk=128 gives an aggregation grid of (2, 2), exercising both the
    # parallel row axis and the k-reduction accumulator (plus the in-kernel XW k-slice).
    num_nodes = 160
    num_features = 8
    hidden_channels = 8
    num_classes = 4
    num_edges = 640

    key = jax.random.PRNGKey(0)
    k_src, k_off, k_x, k_pos, k_w1, k_w2 = jax.random.split(key, 6)

    # Synthetic edge_index [2, E] with no self loops (src != dst).
    src = jax.random.randint(k_src, (num_edges,), 0, num_nodes)
    off = jax.random.randint(k_off, (num_edges,), 1, num_nodes)
    dst = (src + off) % num_nodes
    edge_index = jnp.stack([src, dst]).astype(jnp.int32)

    # Node features and positional embeddings; pos_embeddings is 3D and its flattened
    # leading dims must equal num_nodes (2 * 80 = 160).
    x = jax.random.normal(k_x, (num_nodes, num_features), dtype=jnp.float32)
    pos_embeddings = jax.random.normal(
        k_pos, (2, num_nodes // 2, num_features), dtype=jnp.float32)

    # Deterministic GCNConv parameters (weights ~ small normal, biases zero).
    w1 = 0.1 * jax.random.normal(k_w1, (num_features, hidden_channels), dtype=jnp.float32)
    b1 = jnp.zeros((1, hidden_channels), dtype=jnp.float32)
    w2 = 0.1 * jax.random.normal(k_w2, (hidden_channels, num_classes), dtype=jnp.float32)
    b2 = jnp.zeros((1, num_classes), dtype=jnp.float32)
    params = (w1, b1, w2, b2)

    x_out, pos_out = lspe_gcn_forward(x, edge_index, pos_embeddings, params, tm=128, tk=128)
    jax.block_until_ready((x_out, pos_out))

    # Reference check in plain JAX (f32; kernel streams bf16 so use a looser tolerance).
    a_hat_ref = build_normalized_adjacency(edge_index, num_nodes, dtype=jnp.float32)

    def ref_fwd(feat):
        h = jnp.maximum(a_hat_ref @ (feat @ w1) + b1, 0.0)
        return a_hat_ref @ (h @ w2) + b2

    ref_x = ref_fwd(x)
    ref_pos = ref_fwd(pos_embeddings.reshape(-1, num_features))
    assert x_out.shape == ref_x.shape and pos_out.shape == ref_pos.shape
    assert jnp.allclose(x_out, ref_x, atol=2e-2, rtol=2e-2), "x output mismatch"
    assert jnp.allclose(pos_out, ref_pos, atol=2e-2, rtol=2e-2), "pos output mismatch"

    print("KERNEL_OK")
</pallas_src>

<mosaic_0001>
module attributes {stable_mosaic.version = 11 : i64} {
  func.func @_aggregate_kernel(%arg0: i32, %arg1: i32, %arg2: memref<128x128xbf16, #tpu.memory_space<vmem>>, %arg3: memref<256x256xbf16, #tpu.memory_space<vmem>>, %arg4: memref<1x256xf32, #tpu.memory_space<vmem>>, %arg5: memref<128x256xbf16, #tpu.memory_space<vmem>>, %arg6: memref<128x256xf32, #tpu.memory_space<vmem>>) attributes {dimension_semantics = [#tpu.dimension_semantics<parallel>, #tpu.dimension_semantics<arbitrary>], iteration_bounds = array<i64: 2, 2>, scalar_prefetch = 0 : i64, scratch_operands = 1 : i64, tpu.core_type = #tpu.core_type<tc>, window_params = [{transform_indices = @transform_0, window_bounds = array<i64: 128, 128>}, {pipeline_mode = #tpu.pipeline_mode<synchronous>, transform_indices = @transform_1, window_bounds = array<i64: 256, 256>}, {pipeline_mode = #tpu.pipeline_mode<synchronous>, transform_indices = @transform_2, window_bounds = array<i64: 1, 256>}, {transform_indices = @transform_3, window_bounds = array<i64: 128, 256>}]} {
    %c0_i32 = arith.constant 0 : i32
    %0 = arith.cmpi eq, %arg1, %c0_i32 : i32
    %1 = arith.extui %0 : i1 to i32
    %c0_i32_0 = arith.constant 0 : i32
    %2 = arith.cmpi ne, %1, %c0_i32_0 : i32
    scf.if %2 {
      %cst_8 = arith.constant 0.000000e+00 : f32
      %15 = vector.broadcast %cst_8 : f32 to vector<128x256xf32>
      %c0_9 = arith.constant 0 : index
      %c0_10 = arith.constant 0 : index
      %16 = vector.load %arg6[%c0_9, %c0_10] : memref<128x256xf32, #tpu.memory_space<vmem>>, vector<128x256xf32>
      tpu.vector_store %arg6[%c0_9, %c0_10], %15 {strides = array<i32>} : memref<128x256xf32, #tpu.memory_space<vmem>>, vector<128x256xf32>,
    } else {
    }
    %c128_i32 = arith.constant 128 : i32
    %3 = arith.muli %arg1, %c128_i32 : i32
    %4 = tpu.assume_multiple %3, 128 : i32
    %5 = arith.index_cast %4 : i32 to index
    %c0 = arith.constant 0 : index
    %6 = vector.load %arg3[%5, %c0] : memref<256x256xbf16, #tpu.memory_space<vmem>>, vector<128x256xbf16>
    %c0_1 = arith.constant 0 : index
    %c0_2 = arith.constant 0 : index
    %7 = vector.load %arg6[%c0_1, %c0_2] : memref<128x256xf32, #tpu.memory_space<vmem>>, vector<128x256xf32>
    %c0_3 = arith.constant 0 : index
    %c0_4 = arith.constant 0 : index
    %8 = vector.load %arg2[%c0_3, %c0_4] : memref<128x128xbf16, #tpu.memory_space<vmem>>, vector<128x128xbf16>
    %cst = arith.constant dense<0.000000e+00> : vector<128x256xf32>
    %9 = tpu.matmul %8, %6, %cst {dimension_numbers = #tpu.dot_dimension_numbers<[1], [0], [0], [1], [0, 0, 1, 1], [], []>} : vector<128x128xbf16>, vector<128x256xbf16>, vector<128x256xf32> -> vector<128x256xf32>
    %10 = arith.addf %7, %9 : vector<128x256xf32>
    %c0_5 = arith.constant 0 : index
    %c0_6 = arith.constant 0 : index
    %11 = vector.load %arg6[%c0_5, %c0_6] : memref<128x256xf32, #tpu.memory_space<vmem>>, vector<128x256xf32>
    tpu.vector_store %arg6[%c0_5, %c0_6], %10 {strides = array<i32>} : memref<128x256xf32, #tpu.memory_space<vmem>>, vector<128x256xf32>,
    %c1_i32 = arith.constant 1 : i32
    %12 = arith.cmpi eq, %arg1, %c1_i32 : i32
    %13 = arith.extui %12 : i1 to i32
    %c0_i32_7 = arith.constant 0 : i32
    %14 = arith.cmpi ne, %13, %c0_i32_7 : i32
    scf.if %14 {
      %c0_8 = arith.constant 0 : index
      %c0_9 = arith.constant 0 : index
      %15 = vector.load %arg6[%c0_8, %c0_9] : memref<128x256xf32, #tpu.memory_space<vmem>>, vector<128x256xf32>
      %c0_10 = arith.constant 0 : index
      %c0_11 = arith.constant 0 : index
      %16 = vector.load %arg4[%c0_10, %c0_11] : memref<1x256xf32, #tpu.memory_space<vmem>>, vector<1x256xf32>
      %17 = vector.broadcast %16 : vector<1x256xf32> to vector<128x256xf32>
      %18 = arith.addf %15, %17 : vector<128x256xf32>
      %cst_12 = arith.constant 0.000000e+00 : f32
      %19 = vector.broadcast %cst_12 : f32 to vector<128x256xf32>
      %20 = arith.maximumf %18, %19 : vector<128x256xf32>
      %21 = arith.truncf %20 : vector<128x256xf32> to vector<128x256xbf16>
      %c0_13 = arith.constant 0 : index
      %c0_14 = arith.constant 0 : index
      %22 = vector.load %arg5[%c0_13, %c0_14] : memref<128x256xbf16, #tpu.memory_space<vmem>>, vector<128x256xbf16>
      tpu.vector_store %arg5[%c0_13, %c0_14], %21 {strides = array<i32>} : memref<128x256xbf16, #tpu.memory_space<vmem>>, vector<128x256xbf16>,
    } else {
    }
    return
  }
  func.func @transform_0(%arg0: i32, %arg1: i32) -> (i32, i32) {
    %c0_i32 = arith.constant 0 : i32
    return %arg0, %arg1 : i32, i32
  }
  func.func @transform_1(%arg0: i32, %arg1: i32) -> (i32, i32) {
    %c0_i32 = arith.constant 0 : i32
    %c0_i32_0 = arith.constant 0 : i32
    %c0_i32_1 = arith.constant 0 : i32
    return %c0_i32, %c0_i32_0 : i32, i32
  }
  func.func @transform_2(%arg0: i32, %arg1: i32) -> (i32, i32) {
    %c0_i32 = arith.constant 0 : i32
    %c0_i32_0 = arith.constant 0 : i32
    %c0_i32_1 = arith.constant 0 : i32
    return %c0_i32, %c0_i32_0 : i32, i32
  }
  func.func @transform_3(%arg0: i32, %arg1: i32) -> (i32, i32) {
    %c0_i32 = arith.constant 0 : i32
    %c0_i32_0 = arith.constant 0 : i32
    return %arg0, %c0_i32 : i32, i32
  }
}

</mosaic_0001>

<llo_original>
// kernel: tpu_custom_call.1
$region0: #{tpu_custom_call.1}
  #allocation0 [shape = 'u32[]', space=smem, size = 0x4, offset = 0x4, fixed_abs, tag = 'smem constant byte address 0x4 - core index']
  #allocation1 [shape = 'u32[144,128]{1,0:T(1,128)}', space=vmem, size = 0x12000, scoped, tag = 'internal scratch']
  #allocation2 [shape = 'f32[128,256]{1,0:T(8,128)}', space=vmem, size = 0x20000, scoped, tag = 'scratch operand']
  %s0 = inlined_call_operand.hbm [shape: bf16[256,256], index: 0, kind: input, shape index: {}]
  %s1 = inlined_call_operand.hbm [shape: bf16[256,256], index: 1, kind: input, shape index: {}]
  %s2 = inlined_call_operand.vmem [shape: f32[1,256], index: 2, kind: input, shape index: {}]
  %s3 = inlined_call_operand.hbm [shape: bf16[256,256], index: 3, kind: output, shape index: {}]
  %s4 = sld [smem:[#allocation0]]
  $region61: #{tpu_custom_call.1} parent=0
    _
  %s6 = ssub.s32 1, %s4
  %s7 = scalar_select 0, %s6, %s4
  $region1: #{tpu_custom_call.1} parent=0
    #allocation3 [shape = 'u8[65536]{0}', space=vmem, size = 0x10000, scoped, tag = 'input window, operand 0']
    #allocation4 [shape = 's32[2]{0}', space=sflag, size = 0x8, scoped, tag = 'scoped memory for tpu_custom_call.1']
    #allocation5 [shape = 's32[2]{0}', space=sflag, size = 0x8, scoped, tag = 'scoped memory for tpu_custom_call.1']
    #allocation6 [shape = 'u8[131072]{0}', space=vmem, size = 0x20000, scoped, tag = 'input window, operand 1, single buffered']
    #allocation7 [shape = 's32[1]{0}', space=sflag, size = 0x4, scoped, tag = 'scoped memory for tpu_custom_call.1']
    #allocation8 [shape = 'u8[131072]{0}', space=vmem, size = 0x20000, scoped, tag = 'output window, operand 0']
    %8 = vsyncpa [#allocation4], 0
    %s9 = scalar_lea.sflag [#allocation4], 1
    %10 = vsyncpa %s9, 0
    %11 = vsyncpa [#allocation7], 0
    %12 = vsyncpa [#allocation5], 0
    %s13 = scalar_lea.sflag [#allocation5], 1
    %14 = vsyncpa %s13, 0
    loop: start=0, step=1, limit=6
    $region2: #{tpu_custom_call.1} parent=1 // loop_pre_header
      _
    $region3: #{tpu_custom_call.1} parent=1 // loop_header
      %s16 = sphi 0, %s20
      %p17 = scmp.ge.s32.totalorder %s16, 6
      %s23 = sphi 0, %s35
      %s24 = sphi 0, %s31
      %s25 = sphi 0, %s23
      %s26 = sphi 0, %s24
      %s27 = sphi 0, %s25
      %s28 = sphi 0, %s26
      %s40 = sphi 0, %s42
      %s43 = sphi 0, %s40
      %s44 = sphi 0, %s43
      %s60 = sphi 0, %s44
      %s64 = sphi 0, %s64
      %s66 = sphi 0, %s64
      %s67 = sphi 0, %s66
      %s81 = sphi 0, %s67
      %s85 = sphi 0, %s85
      %s87 = sphi 0, %s85
      %s88 = sphi 0, %s87
      %s102 = sphi 0, %s88
      %s108 = sphi 0, %s110
      %s111 = sphi 0, %s108
      %s112 = sphi 0, %s111
      %s128 = sphi 0, %s112
    $region4: #{tpu_custom_call.1} parent=1 // loop_header_branch
      %19 = sbr.rel (%p17) target = $region8
    $region5: #{tpu_custom_call.1} parent=1 // loop_body
      %s21 = ssub.s32 %s16, 1
      %s22 = ssub.s32 %s16, 2
      %s29 = sadd.s32 1, %s24
      %p30 = scmp.ge.s32.totalorder %s29, 2
      %s31 = scalar_select %p30, 0, %s29
      %s32 = sadd.s32 1, %s23
      %s33 = scalar_select %p30, %s32, %s23
      %p34 = scmp.ge.s32.totalorder %s33, 2
      %s35 = scalar_select %p34, 0, %s33
      %s36 = ssub.s32 %s23, %s35
      %s37 = ssub.s32 %s24, %s31
      %s38 = sor.u32 %s36, %s37
      %p39 = scmp.eq.s32.totalorder %s38, 0
      %s41 = sadd.s32 %s40, 1
      %s42 = scalar_select %p39, %s40, %s41
      %p45 = pneg %p39
      %p46 = scmp.eq.s32.totalorder %s16, 3
      %p47 = por %p45, %p46
      %p48 = scmp.ne.s32.totalorder %s40, %s43
      %p49 = scmp.eq.s32.totalorder %s16, 0
      %p50 = por %p48, %p49
      %p51 = scmp.ne.s32.totalorder %s40, %s43
      %p52 = scmp.eq.s32.totalorder %s21, 3
      %p53 = por %p51, %p52
      %p54 = scmp.ne.s32.totalorder %s43, %s44
      %p55 = scmp.eq.s32.totalorder %s21, 0
      %p56 = por %p54, %p55
      %p57 = scmp.ne.s32.totalorder %s43, %s44
      %p58 = scmp.eq.s32.totalorder %s22, 3
      %p59 = por %p57, %p58
      %p61 = scmp.ne.s32.totalorder %s44, %s60
      %p62 = scmp.eq.s32.totalorder %s22, 0
      %p63 = por %p61, %p62
      %s65 = sadd.s32 %s64, 1
      %p68 = scmp.eq.s32.totalorder %s16, 3
      %p69 = scmp.ne.s32.totalorder %s64, %s66
      %p70 = scmp.eq.s32.totalorder %s16, 0
      %p71 = por %p69, %p70
      %p72 = scmp.ne.s32.totalorder %s64, %s66
      %p73 = scmp.eq.s32.totalorder %s21, 3
      %p74 = por %p72, %p73
      %p75 = scmp.ne.s32.totalorder %s66, %s67
      %p76 = scmp.eq.s32.totalorder %s21, 0
      %p77 = por %p75, %p76
      %p78 = scmp.ne.s32.totalorder %s66, %s67
      %p79 = scmp.eq.s32.totalorder %s22, 3
      %p80 = por %p78, %p79
      %p82 = scmp.ne.s32.totalorder %s67, %s81
      %p83 = scmp.eq.s32.totalorder %s22, 0
      %p84 = por %p82, %p83
      %s86 = sadd.s32 %s85, 1
      %p89 = scmp.eq.s32.totalorder %s16, 3
      %p90 = scmp.ne.s32.totalorder %s85, %s87
      %p91 = scmp.eq.s32.totalorder %s16, 0
      %p92 = por %p90, %p91
      %p93 = scmp.ne.s32.totalorder %s85, %s87
      %p94 = scmp.eq.s32.totalorder %s21, 3
      %p95 = por %p93, %p94
      %p96 = scmp.ne.s32.totalorder %s87, %s88
      %p97 = scmp.eq.s32.totalorder %s21, 0
      %p98 = por %p96, %p97
      %p99 = scmp.ne.s32.totalorder %s87, %s88
      %p100 = scmp.eq.s32.totalorder %s22, 3
      %p101 = por %p99, %p100
      %p103 = scmp.ne.s32.totalorder %s88, %s102
      %p104 = scmp.eq.s32.totalorder %s22, 0
      %p105 = por %p103, %p104
      %s106 = ssub.s32 %s23, %s35
      %p107 = scmp.eq.s32.totalorder %s106, 0
      %s109 = sadd.s32 %s108, 1
      %s110 = scalar_select %p107, %s108, %s109
      %p113 = pneg %p107
      %p114 = scmp.eq.s32.totalorder %s16, 3
      %p115 = por %p113, %p114
      %p116 = scmp.ne.s32.totalorder %s108, %s111
      %p117 = scmp.eq.s32.totalorder %s16, 0
      %p118 = por %p116, %p117
      %p119 = scmp.ne.s32.totalorder %s108, %s111
      %p120 = scmp.eq.s32.totalorder %s21, 3
      %p121 = por %p119, %p120
      %p122 = scmp.ne.s32.totalorder %s111, %s112
      %p123 = scmp.eq.s32.totalorder %s21, 0
      %p124 = por %p122, %p123
      %p125 = scmp.ne.s32.totalorder %s111, %s112
      %p126 = scmp.eq.s32.totalorder %s22, 3
      %p127 = por %p125, %p126
      %p129 = scmp.ne.s32.totalorder %s112, %s128
      %p130 = scmp.eq.s32.totalorder %s22, 0
      %p131 = por %p129, %p130
      %p132 = scmp.le.s32.totalorder 1, %s16
      %p133 = scmp.lt.s32.totalorder %s16, 5
      %p134 = pnand %p132, %p133
      %p135 = pneg %p134
      // Predicated region
      $region9: #{tpu_custom_call.1} parent=5 // pred_check
        _
      $region10: #{tpu_custom_call.1} parent=5 // pred_check_branch
        %137 = sbr.rel (%p134) target = $region12
      $region11: #{tpu_custom_call.1} parent=5 // pred_region
        %s138 = ssub.s32 %s16, 1
        // Predicated region
        $region13: #{tpu_custom_call.1} parent=11 // pred_check
          %p139 = pneg %p77
        $region14: #{tpu_custom_call.1} parent=11 // pred_check_branch
          %141 = sbr.rel (%p139) target = $region16
        $region15: #{tpu_custom_call.1} parent=11 // pred_region
          %s143 = ssub.s32 4096, 4096
          %144 = vsyncadd [#allocation7], %s143
          %s145 = sshll.u32 [#allocation6], 4
          %s146 = int_to_ptr.vmem [resolvable:$true] %s145
          %151 = dma.hbm_to_vmem [thread:$0]  %s1, 4096, %s146, [#allocation7], 128, 128, 8
        $region16: #{tpu_custom_call.1} parent=11 // pred_fallthru
          _
        // Predicated region
        $region17: #{tpu_custom_call.1} parent=11 // pred_check
          %p152 = pneg %p98
        $region18: #{tpu_custom_call.1} parent=11 // pred_check_branch
          %154 = sbr.rel (%p152) target = $region20
        $region19: #{tpu_custom_call.1} parent=11 // pred_region
          _
        $region20: #{tpu_custom_call.1} parent=11 // pred_fallthru
          _
      $region12: #{tpu_custom_call.1} parent=5 // pred_fallthru
        _
      %p155 = scmp.lt.s32.totalorder %s16, 4
      // Predicated region
      $region21: #{tpu_custom_call.1} parent=5 // pred_check
        %p156 = pneg %p155
      $region22: #{tpu_custom_call.1} parent=5 // pred_check_branch
        %158 = sbr.rel (%p156) target = $region24
      $region23: #{tpu_custom_call.1} parent=5 // pred_region
        // Predicated region
        $region25: #{tpu_custom_call.1} parent=23 // pred_check
          %p159 = pneg %p50
        $region26: #{tpu_custom_call.1} parent=23 // pred_check_branch
          %161 = sbr.rel (%p159) target = $region28
        $region27: #{tpu_custom_call.1} parent=23 // pred_region
          %s162 = sand.u32 %s40, 1
          %s163 = scalar_lea.sflag [#allocation4], %s162
          %s164 = sand.u32 %s40, 1
          %s165 = smul.addr %s164, 64
          %s166 = scalar_lea.vmem [#allocation3], %s165
          %s167 = smul.u32 16, %s23
          %s169 = ssub.s32 1024, 1024
          %170 = vsyncadd %s163, %s169
          %s171 = smul.addr %s167, 2
          %s172 = sadd.s32 %s24, %s171
          %s173 = smul.addr %s172, 64
          %s174 = scalar_lea.hbm %s0, %s173
          %s175 = sshll.u32 %s166, 4
          %s176 = int_to_ptr.vmem [resolvable:$true] %s175
          %181 = dma.hbm_to_vmem [thread:$0]  %s174, 1024, %s176, %s163, 128, 64, 4
        $region28: #{tpu_custom_call.1} parent=23 // pred_fallthru
          _
      $region24: #{tpu_custom_call.1} parent=5 // pred_fallthru
        _
      %p182 = scmp.le.s32.totalorder 1, %s16
      %p183 = scmp.lt.s32.totalorder %s16, 5
      %p184 = pnand %p182, %p183
      %p185 = pneg %p184
      // Predicated region
      $region29: #{tpu_custom_call.1} parent=5 // pred_check
        _
      $region30: #{tpu_custom_call.1} parent=5 // pred_check_branch
        %187 = sbr.rel (%p184) target = $region32
      $region31: #{tpu_custom_call.1} parent=5 // pred_region
        %s188 = ssub.s32 %s16, 1
        %s189 = sand.u32 %s43, 1
        %s190 = scalar_lea.sflag [#allocation4], %s189
        %s191 = sand.u32 %s43, 1
        %s192 = smul.addr %s191, 64
        %s193 = scalar_lea.vmem [#allocation3], %s192
        // Predicated region
        $region33: #{tpu_custom_call.1} parent=31 // pred_check
          %p194 = pneg %p56
        $region34: #{tpu_custom_call.1} parent=31 // pred_check_branch
          %196 = sbr.rel (%p194) target = $region36
        $region35: #{tpu_custom_call.1} parent=31 // pred_region
          %197 = dma.done %s190, 1024
        $region36: #{tpu_custom_call.1} parent=31 // pred_fallthru
          _
        // Predicated region
        $region37: #{tpu_custom_call.1} parent=31 // pred_check
          %p198 = pneg %p77
        $region38: #{tpu_custom_call.1} parent=31 // pred_check_branch
          %200 = sbr.rel (%p198) target = $region40
        $region39: #{tpu_custom_call.1} parent=31 // pred_region
          %201 = dma.done [#allocation7], 4096
        $region40: #{tpu_custom_call.1} parent=31 // pred_fallthru
          _
        %s202 = sand.u32 %s43, 1
        %s203 = scalar_lea.sflag [#allocation4], %s202
        %s204 = sand.u32 %s43, 1
        %s205 = smul.addr %s204, 64
        %s206 = scalar_lea.vmem [#allocation3], %s205
        %p207 = pneg %p56
        %p208 = pneg %p53
        %p209 = pneg %p77
        %p210 = pneg %p74
        %p211 = pneg %p98
        %p212 = pneg %p95
        %p213 = pneg %p124
        %p214 = pneg %p121
        %s215 = sand.u32 %s111, 1
        %s216 = scalar_lea.sflag [#allocation5], %s215
        %s217 = sand.u32 %s111, 1
        %s218 = smul.addr %s217, 128
        %s219 = scalar_lea.vmem [#allocation8], %s218
        %s220 = smul.u32 16, %s25
        %s221 = smul.u32 16, %s25
        %p223 = scmp.eq.s32.totalorder %s26, 0
        // Predicated region
        $region41: #{tpu_custom_call.1} parent=31 // pred_check
          %p224 = pneg %p223
        $region42: #{tpu_custom_call.1} parent=31 // pred_check_branch
          %226 = sbr.rel (%p224) target = $region44
        $region43: #{tpu_custom_call.1} parent=31 // pred_region
          %227 = vst [vmem:[#allocation2] sm:$0xff] 0.0
          %228 = vst [vmem:[#allocation2 + $0x8] sm:$0xff] 0.0
          %229 = vst [vmem:[#allocation2 + $0x10] sm:$0xff] 0.0
          %230 = vst [vmem:[#allocation2 + $0x18] sm:$0xff] 0.0
          %231 = vst [vmem:[#allocation2 + $0x20] sm:$0xff] 0.0
          %232 = vst [vmem:[#allocation2 + $0x28] sm:$0xff] 0.0
          %233 = vst [vmem:[#allocation2 + $0x30] sm:$0xff] 0.0
          %234 = vst [vmem:[#allocation2 + $0x38] sm:$0xff] 0.0
          %235 = vst [vmem:[#allocation2 + $0x40] sm:$0xff] 0.0
          %236 = vst [vmem:[#allocation2 + $0x48] sm:$0xff] 0.0
          %237 = vst [vmem:[#allocation2 + $0x50] sm:$0xff] 0.0
          %238 = vst [vmem:[#allocation2 + $0x58] sm:$0xff] 0.0
          %239 = vst [vmem:[#allocation2 + $0x60] sm:$0xff] 0.0
          %240 = vst [vmem:[#allocation2 + $0x68] sm:$0xff] 0.0
          %241 = vst [vmem:[#allocation2 + $0x70] sm:$0xff] 0.0
          %242 = vst [vmem:[#allocation2 + $0x78] sm:$0xff] 0.0
          %243 = vst [vmem:[#allocation2 + $0x80] sm:$0xff] 0.0
          %244 = vst [vmem:[#allocation2 + $0x88] sm:$0xff] 0.0
          %245 = vst [vmem:[#allocation2 + $0x90] sm:$0xff] 0.0
          %246 = vst [vmem:[#allocation2 + $0x98] sm:$0xff] 0.0
          %247 = vst [vmem:[#allocation2 + $0xa0] sm:$0xff] 0.0
          %248 = vst [vmem:[#allocation2 + $0xa8] sm:$0xff] 0.0
          %249 = vst [vmem:[#allocation2 + $0xb0] sm:$0xff] 0.0
          %250 = vst [vmem:[#allocation2 + $0xb8] sm:$0xff] 0.0
          %251 = vst [vmem:[#allocation2 + $0xc0] sm:$0xff] 0.0
          %252 = vst [vmem:[#allocation2 + $0xc8] sm:$0xff] 0.0
          %253 = vst [vmem:[#allocation2 + $0xd0] sm:$0xff] 0.0
          %254 = vst [vmem:[#allocation2 + $0xd8] sm:$0xff] 0.0
          %255 = vst [vmem:[#allocation2 + $0xe0] sm:$0xff] 0.0
          %256 = vst [vmem:[#allocation2 + $0xe8] sm:$0xff] 0.0
          %257 = vst [vmem:[#allocation2 + $0xf0] sm:$0xff] 0.0
          %258 = vst [vmem:[#allocation2 + $0xf8] sm:$0xff] 0.0
        $region44: #{tpu_custom_call.1} parent=31 // pred_fallthru
          _
        %s259 = smul.u32 %s26, 128
        %s260 = sshra.s32 %s259, 3
        %s261 = sand.u32 %s259, 7
        %s262 = smul.u32 %s260, 2
        %s263 = smul.addr %s262, 4
        %s264 = scalar_lea.vmem [#allocation6], %s263
        %v265 = vld [vmem:[%s264] sm:$0xff]
        %v266 = vld [vmem:[%s264 + $0x8] sm:$0xff]
        %v267 = vld [vmem:[%s264 + $0x10] sm:$0xff]
        %v268 = vld [vmem:[%s264 + $0x18] sm:$0xff]
        %v269 = vld [vmem:[%s264 + $0x20] sm:$0xff]
        %v270 = vld [vmem:[%s264 + $0x28] sm:$0xff]
        %v271 = vld [vmem:[%s264 + $0x30] sm:$0xff]
        %v272 = vld [vmem:[%s264 + $0x38] sm:$0xff]
        %v273 = vld [vmem:[%s264 + $0x40] sm:$0xff]
        %v274 = vld [vmem:[%s264 + $0x48] sm:$0xff]
        %v275 = vld [vmem:[%s264 + $0x50] sm:$0xff]
        %v276 = vld [vmem:[%s264 + $0x58] sm:$0xff]
        %v277 = vld [vmem:[%s264 + $0x60] sm:$0xff]
        %v278 = vld [vmem:[%s264 + $0x68] sm:$0xff]
        %v279 = vld [vmem:[%s264 + $0x70] sm:$0xff]
        %v280 = vld [vmem:[%s264 + $0x78] sm:$0xff]
        %v281 = vld [vmem:[#allocation2] sm:$0xff]
        %v282 = vld [vmem:[#allocation2 + $0x8] sm:$0xff]
        %v283 = vld [vmem:[#allocation2 + $0x10] sm:$0xff]
        %v284 = vld [vmem:[#allocation2 + $0x18] sm:$0xff]
        %v285 = vld [vmem:[#allocation2 + $0x20] sm:$0xff]
        %v286 = vld [vmem:[#allocation2 + $0x28] sm:$0xff]
        %v287 = vld [vmem:[#allocation2 + $0x30] sm:$0xff]
        %v288 = vld [vmem:[#allocation2 + $0x38] sm:$0xff]
        %v289 = vld [vmem:[#allocation2 + $0x40] sm:$0xff]
        %v290 = vld [vmem:[#allocation2 + $0x48] sm:$0xff]
        %v291 = vld [vmem:[#allocation2 + $0x50] sm:$0xff]
        %v292 = vld [vmem:[#allocation2 + $0x58] sm:$0xff]
        %v293 = vld [vmem:[#allocation2 + $0x60] sm:$0xff]
        %v294 = vld [vmem:[#allocation2 + $0x68] sm:$0xff]
        %v295 = vld [vmem:[#allocation2 + $0x70] sm:$0xff]
        %v296 = vld [vmem:[#allocation2 + $0x78] sm:$0xff]
        %v297 = vld [vmem:[#allocation2 + $0x80] sm:$0xff]
        %v298 = vld [vmem:[#allocation2 + $0x88] sm:$0xff]
        %v299 = vld [vmem:[#allocation2 + $0x90] sm:$0xff]
        %v300 = vld [vmem:[#allocation2 + $0x98] sm:$0xff]
        %v301 = vld [vmem:[#allocation2 + $0xa0] sm:$0xff]
        %v302 = vld [vmem:[#allocation2 + $0xa8] sm:$0xff]
        %v303 = vld [vmem:[#allocation2 + $0xb0] sm:$0xff]
        %v304 = vld [vmem:[#allocation2 + $0xb8] sm:$0xff]
        %v305 = vld [vmem:[#allocation2 + $0xc0] sm:$0xff]
        %v306 = vld [vmem:[#allocation2 + $0xc8] sm:$0xff]
        %v307 = vld [vmem:[#allocation2 + $0xd0] sm:$0xff]
        %v308 = vld [vmem:[#allocation2 + $0xd8] sm:$0xff]
        %v309 = vld [vmem:[#allocation2 + $0xe0] sm:$0xff]
        %v310 = vld [vmem:[#allocation2 + $0xe8] sm:$0xff]
        %v311 = vld [vmem:[#allocation2 + $0xf0] sm:$0xff]
        %v312 = vld [vmem:[#allocation2 + $0xf8] sm:$0xff]
        %v313 = vld [vmem:[%s193] sm:$0xf]
        %v314 = vld [vmem:[%s193 + $0x4] sm:$0xf]
        %v315 = vld [vmem:[%s193 + $0x8] sm:$0xf]
        %v316 = vld [vmem:[%s193 + $0xc] sm:$0xf]
        %v317 = vld [vmem:[%s193 + $0x10] sm:$0xf]
        %v318 = vld [vmem:[%s193 + $0x14] sm:$0xf]
        %v319 = vld [vmem:[%s193 + $0x18] sm:$0xf]
        %v320 = vld [vmem:[%s193 + $0x1c] sm:$0xf]
        %v321 = vld [vmem:[%s193 + $0x20] sm:$0xf]
        %v322 = vld [vmem:[%s193 + $0x24] sm:$0xf]
        %v323 = vld [vmem:[%s193 + $0x28] sm:$0xf]
        %v324 = vld [vmem:[%s193 + $0x2c] sm:$0xf]
        %v325 = vld [vmem:[%s193 + $0x30] sm:$0xf]
        %v326 = vld [vmem:[%s193 + $0x34] sm:$0xf]
        %v327 = vld [vmem:[%s193 + $0x38] sm:$0xf]
        %v328 = vld [vmem:[%s193 + $0x3c] sm:$0xf]
        %v345 = vunpack.c.l.b16 %v313
        %v346 = vunpack.c.l.b16 %v314
        %v347 = vunpack.c.l.b16 %v315
        %v348 = vunpack.c.l.b16 %v316
        %v349 = vunpack.c.l.b16 %v317
        %v350 = vunpack.c.l.b16 %v318
        %v351 = vunpack.c.l.b16 %v319
        %v352 = vunpack.c.l.b16 %v320
        %v353 = vunpack.c.l.b16 %v321
        %v354 = vunpack.c.l.b16 %v322
        %v355 = vunpack.c.l.b16 %v323
        %v356 = vunpack.c.l.b16 %v324
        %v357 = vunpack.c.l.b16 %v325
        %v358 = vunpack.c.l.b16 %v326
        %v359 = vunpack.c.l.b16 %v327
        %v360 = vunpack.c.l.b16 %v328
        %v361 = vpack.c.b16 %v346, %v345
        %v362 = vpack.c.b16 %v348, %v347
        %v363 = vpack.c.b16 %v350, %v349
        %v364 = vpack.c.b16 %v352, %v351
        %v365 = vpack.c.b16 %v354, %v353
        %v366 = vpack.c.b16 %v356, %v355
        %v367 = vpack.c.b16 %v358, %v357
        %v368 = vpack.c.b16 %v360, %v359
        %v393 = vunpack.c.l.b16 %v265
        %v394 = vunpack.c.h.b16 %v265
        %v395 = vunpack.c.l.b16 %v266
        %v396 = vunpack.c.h.b16 %v266
        %v397 = vunpack.c.l.b16 %v267
        %v398 = vunpack.c.h.b16 %v267
        %v399 = vunpack.c.l.b16 %v268
        %v400 = vunpack.c.h.b16 %v268
        %v401 = vunpack.c.l.b16 %v269
        %v402 = vunpack.c.h.b16 %v269
        %v403 = vunpack.c.l.b16 %v270
        %v404 = vunpack.c.h.b16 %v270
        %v405 = vunpack.c.l.b16 %v271
        %v406 = vunpack.c.h.b16 %v271
        %v407 = vunpack.c.l.b16 %v272
        %v408 = vunpack.c.h.b16 %v272
        %v409 = vunpack.c.l.b16 %v273
        %v410 = vunpack.c.h.b16 %v273
        %v411 = vunpack.c.l.b16 %v274
        %v412 = vunpack.c.h.b16 %v274
        %v413 = vunpack.c.l.b16 %v275
        %v414 = vunpack.c.h.b16 %v275
        %v415 = vunpack.c.l.b16 %v276
        %v416 = vunpack.c.h.b16 %v276
        %v417 = vunpack.c.l.b16 %v277
        %v418 = vunpack.c.h.b16 %v277
        %v419 = vunpack.c.l.b16 %v278
        %v420 = vunpack.c.h.b16 %v278
        %v421 = vunpack.c.l.b16 %v279
        %v422 = vunpack.c.h.b16 %v279
        %v423 = vunpack.c.l.b16 %v280
        %v424 = vunpack.c.h.b16 %v280
        %v425 = vpack.c.b16 %v395, %v393
        %v426 = vpack.c.b16 %v396, %v394
        %v427 = vpack.c.b16 %v399, %v397
        %v428 = vpack.c.b16 %v400, %v398
        %v429 = vpack.c.b16 %v403, %v401
        %v430 = vpack.c.b16 %v404, %v402
        %v431 = vpack.c.b16 %v407, %v405
        %v432 = vpack.c.b16 %v408, %v406
        %v433 = vpack.c.b16 %v411, %v409
        %v434 = vpack.c.b16 %v412, %v410
        %v435 = vpack.c.b16 %v415, %v413
        %v436 = vpack.c.b16 %v416, %v414
        %v437 = vpack.c.b16 %v419, %v417
        %v438 = vpack.c.b16 %v420, %v418
        %v439 = vpack.c.b16 %v423, %v421
        %v440 = vpack.c.b16 %v424, %v422
        %457 = vmatprep.subr.bf16.mxu0 %v426
        %458 = vmatpush1.bf16.msra.mxu0 %v425
        %459 = vmatprep.subr.bf16.mxu0 %v428
        %460 = vmatpush1.bf16.msra.mxu0 %v427
        %461 = vmatprep.subr.bf16.mxu0 %v430
        %462 = vmatpush1.bf16.msra.mxu0 %v429
        %463 = vmatprep.subr.bf16.mxu0 %v432
        %464 = vmatpush1.bf16.msra.mxu0 %v431
        %465 = vmatprep.subr.bf16.mxu0 %v434
        %466 = vmatpush1.bf16.msra.mxu0 %v433
        %467 = vmatprep.subr.bf16.mxu0 %v436
        %468 = vmatpush1.bf16.msra.mxu0 %v435
        %469 = vmatprep.subr.bf16.mxu0 %v438
        %470 = vmatpush1.bf16.msra.mxu0 %v437
        %471 = vmatprep.subr.bf16.mxu0 %v440
        %472 = vmatpush1.bf16.msra.mxu0 %v439
        %473 = vmatprep.subr.bf16.mxu0 0
        %474 = vmatpush1.bf16.msra.mxu0 0
        %475 = vmatprep.subr.bf16.mxu0 0
        %476 = vmatpush1.bf16.msra.mxu0 0
        %477 = vmatprep.subr.bf16.mxu0 0
        %478 = vmatpush1.bf16.msra.mxu0 0
        %479 = vmatprep.subr.bf16.mxu0 0
        %480 = vmatpush1.bf16.msra.mxu0 0
        %481 = vmatprep.subr.bf16.mxu0 0
        %482 = vmatpush1.bf16.msra.mxu0 0
        %483 = vmatprep.subr.bf16.mxu0 0
        %484 = vmatpush1.bf16.msra.mxu0 0
        %485 = vmatprep.subr.bf16.mxu0 0
        %486 = vmatpush1.bf16.msra.mxu0 0
        %487 = vmatprep.subr.bf16.mxu0 0
        %488 = vmatpush1.bf16.msra.mxu0 0
        %489 = vmatprep.mubr.bf16.mxu0 0
        %490 = vmatmul.mubr.bf16.gmra.mrb[0].mxu0 %v361
        %v491 = vpop.f32.mrb[0].mxu0
        %v492 = vadd.f32 0.0, %v491
        %v493 = vpop.f32.mrb[0].mxu0
        %v494 = vadd.f32 0.0, %v493
        %v495 = vpop.f32.mrb[0].mxu0
        %v496 = vadd.f32 0.0, %v495
        %v497 = vpop.f32.mrb[0].mxu0
        %v498 = vadd.f32 0.0, %v497
        %499 = vmatprep.mubr.bf16.mxu0 0
        %500 = vmatmul.mubr.bf16.gmra.mrb[0].mxu0 %v362
        %v501 = vpop.f32.mrb[0].mxu0
        %v502 = vadd.f32 0.0, %v501
        %v503 = vpop.f32.mrb[0].mxu0
        %v504 = vadd.f32 0.0, %v503
        %v505 = vpop.f32.mrb[0].mxu0
        %v506 = vadd.f32 0.0, %v505
        %v507 = vpop.f32.mrb[0].mxu0
        %v508 = vadd.f32 0.0, %v507
        %509 = vmatprep.mubr.bf16.mxu0 0
        %510 = vmatmul.mubr.bf16.gmra.mrb[0].mxu0 %v363
        %v511 = vpop.f32.mrb[0].mxu0
        %v512 = vadd.f32 0.0, %v511
        %v513 = vpop.f32.mrb[0].mxu0
        %v514 = vadd.f32 0.0, %v513
        %v515 = vpop.f32.mrb[0].mxu0
        %v516 = vadd.f32 0.0, %v515
        %v517 = vpop.f32.mrb[0].mxu0
        %v518 = vadd.f32 0.0, %v517
        %519 = vmatprep.mubr.bf16.mxu0 0
        %520 = vmatmul.mubr.bf16.gmra.mrb[0].mxu0 %v364
        %v521 = vpop.f32.mrb[0].mxu0
        %v522 = vadd.f32 0.0, %v521
        %v523 = vpop.f32.mrb[0].mxu0
        %v524 = vadd.f32 0.0, %v523
        %v525 = vpop.f32.mrb[0].mxu0
        %v526 = vadd.f32 0.0, %v525
        %v527 = vpop.f32.mrb[0].mxu0
        %v528 = vadd.f32 0.0, %v527
        %529 = vmatprep.mubr.bf16.mxu0 0
        %530 = vmatmul.mubr.bf16.gmra.mrb[0].mxu0 %v365
        %v531 = vpop.f32.mrb[0].mxu0
        %v532 = vadd.f32 0.0, %v531
        %v533 = vpop.f32.mrb[0].mxu0
        %v534 = vadd.f32 0.0, %v533
        %v535 = vpop.f32.mrb[0].mxu0
        %v536 = vadd.f32 0.0, %v535
        %v537 = vpop.f32.mrb[0].mxu0
        %v538 = vadd.f32 0.0, %v537
        %539 = vmatprep.mubr.bf16.mxu0 0
        %540 = vmatmul.mubr.bf16.gmra.mrb[0].mxu0 %v366
        %v541 = vpop.f32.mrb[0].mxu0
        %v542 = vadd.f32 0.0, %v541
        %v543 = vpop.f32.mrb[0].mxu0
        %v544 = vadd.f32 0.0, %v543
        %v545 = vpop.f32.mrb[0].mxu0
        %v546 = vadd.f32 0.0, %v545
        %v547 = vpop.f32.mrb[0].mxu0
        %v548 = vadd.f32 0.0, %v547
        %549 = vmatprep.mubr.bf16.mxu0 0
        %550 = vmatmul.mubr.bf16.gmra.mrb[0].mxu0 %v367
        %v551 = vpop.f32.mrb[0].mxu0
        %v552 = vadd.f32 0.0, %v551
        %v553 = vpop.f32.mrb[0].mxu0
        %v554 = vadd.f32 0.0, %v553
        %v555 = vpop.f32.mrb[0].mxu0
        %v556 = vadd.f32 0.0, %v555
        %v557 = vpop.f32.mrb[0].mxu0
        %v558 = vadd.f32 0.0, %v557
        %559 = vmatprep.mubr.bf16.mxu0 0
        %560 = vmatmul.mubr.bf16.gmra.mrb[0].mxu0 %v368
        %v561 = vpop.f32.mrb[0].mxu0
        %v562 = vadd.f32 0.0, %v561
        %v563 = vpop.f32.mrb[0].mxu0
        %v564 = vadd.f32 0.0, %v563
        %v565 = vpop.f32.mrb[0].mxu0
        %v566 = vadd.f32 0.0, %v565
        %v567 = vpop.f32.mrb[0].mxu0
        %v568 = vadd.f32 0.0, %v567
        %569 = vdwg.mxu0
        %v570 = vadd.f32 %v281, %v492
        %v571 = vadd.f32 %v282, %v494
        %v572 = vadd.f32 %v283, %v496
        %v573 = vadd.f32 %v284, %v498
        %v574 = vadd.f32 %v285, %v502
        %v575 = vadd.f32 %v286, %v504
        %v576 = vadd.f32 %v287, %v506
        %v577 = vadd.f32 %v288, %v508
        %v578 = vadd.f32 %v289, %v512
        %v579 = vadd.f32 %v290, %v514
        %v580 = vadd.f32 %v291, %v516
        %v581 = vadd.f32 %v292, %v518
        %v582 = vadd.f32 %v293, %v522
        %v583 = vadd.f32 %v294, %v524
        %v584 = vadd.f32 %v295, %v526
        %v585 = vadd.f32 %v296, %v528
        %v586 = vadd.f32 %v297, %v532
        %v587 = vadd.f32 %v298, %v534
        %v588 = vadd.f32 %v299, %v536
        %v589 = vadd.f32 %v300, %v538
        %v590 = vadd.f32 %v301, %v542
        %v591 = vadd.f32 %v302, %v544
        %v592 = vadd.f32 %v303, %v546
        %v593 = vadd.f32 %v304, %v548
        %v594 = vadd.f32 %v305, %v552
        %v595 = vadd.f32 %v306, %v554
        %v596 = vadd.f32 %v307, %v556
        %v597 = vadd.f32 %v308, %v558
        %v598 = vadd.f32 %v309, %v562
        %v599 = vadd.f32 %v310, %v564
        %v600 = vadd.f32 %v311, %v566
        %v601 = vadd.f32 %v312, %v568
        %602 = vst [vmem:[#allocation2] sm:$0xff] %v570
        %603 = vst [vmem:[#allocation2 + $0x8] sm:$0xff] %v571
        %604 = vst [vmem:[#allocation2 + $0x10] sm:$0xff] %v572
        %605 = vst [vmem:[#allocation2 + $0x18] sm:$0xff] %v573
        %606 = vst [vmem:[#allocation2 + $0x20] sm:$0xff] %v574
        %607 = vst [vmem:[#allocation2 + $0x28] sm:$0xff] %v575
        %608 = vst [vmem:[#allocation2 + $0x30] sm:$0xff] %v576
        %609 = vst [vmem:[#allocation2 + $0x38] sm:$0xff] %v577
        %610 = vst [vmem:[#allocation2 + $0x40] sm:$0xff] %v578
        %611 = vst [vmem:[#allocation2 + $0x48] sm:$0xff] %v579
        %612 = vst [vmem:[#allocation2 + $0x50] sm:$0xff] %v580
        %613 = vst [vmem:[#allocation2 + $0x58] sm:$0xff] %v581
        %614 = vst [vmem:[#allocation2 + $0x60] sm:$0xff] %v582
        %615 = vst [vmem:[#allocation2 + $0x68] sm:$0xff] %v583
        %616 = vst [vmem:[#allocation2 + $0x70] sm:$0xff] %v584
        %617 = vst [vmem:[#allocation2 + $0x78] sm:$0xff] %v585
        %618 = vst [vmem:[#allocation2 + $0x80] sm:$0xff] %v586
        %619 = vst [vmem:[#allocation2 + $0x88] sm:$0xff] %v587
        %620 = vst [vmem:[#allocation2 + $0x90] sm:$0xff] %v588
        %621 = vst [vmem:[#allocation2 + $0x98] sm:$0xff] %v589
        %622 = vst [vmem:[#allocation2 + $0xa0] sm:$0xff] %v590
        %623 = vst [vmem:[#allocation2 + $0xa8] sm:$0xff] %v591
        %624 = vst [vmem:[#allocation2 + $0xb0] sm:$0xff] %v592
        %625 = vst [vmem:[#allocation2 + $0xb8] sm:$0xff] %v593
        %626 = vst [vmem:[#allocation2 + $0xc0] sm:$0xff] %v594
        %627 = vst [vmem:[#allocation2 + $0xc8] sm:$0xff] %v595
        %628 = vst [vmem:[#allocation2 + $0xd0] sm:$0xff] %v596
        %629 = vst [vmem:[#allocation2 + $0xd8] sm:$0xff] %v597
        %630 = vst [vmem:[#allocation2 + $0xe0] sm:$0xff] %v598
        %631 = vst [vmem:[#allocation2 + $0xe8] sm:$0xff] %v599
        %632 = vst [vmem:[#allocation2 + $0xf0] sm:$0xff] %v600
        %633 = vst [vmem:[#allocation2 + $0xf8] sm:$0xff] %v601
        %p634 = scmp.eq.s32.totalorder %s26, 1
        // Predicated region
        $region45: #{tpu_custom_call.1} parent=31 // pred_check
          %p635 = pneg %p634
        $region46: #{tpu_custom_call.1} parent=31 // pred_check_branch
          %637 = sbr.rel (%p635) target = $region48
        $region47: #{tpu_custom_call.1} parent=31 // pred_region
          %v638 = vld [vmem:[#allocation2] sm:$0xff]
          %v639 = vld [vmem:[#allocation2 + $0x8] sm:$0xff]
          %v640 = vld [vmem:[#allocation2 + $0x10] sm:$0xff]
          %v641 = vld [vmem:[#allocation2 + $0x18] sm:$0xff]
          %v642 = vld [vmem:[#allocation2 + $0x20] sm:$0xff]
          %v643 = vld [vmem:[#allocation2 + $0x28] sm:$0xff]
          %v644 = vld [vmem:[#allocation2 + $0x30] sm:$0xff]
          %v645 = vld [vmem:[#allocation2 + $0x38] sm:$0xff]
          %v646 = vld [vmem:[#allocation2 + $0x40] sm:$0xff]
          %v647 = vld [vmem:[#allocation2 + $0x48] sm:$0xff]
          %v648 = vld [vmem:[#allocation2 + $0x50] sm:$0xff]
          %v649 = vld [vmem:[#allocation2 + $0x58] sm:$0xff]
          %v650 = vld [vmem:[#allocation2 + $0x60] sm:$0xff]
          %v651 = vld [vmem:[#allocation2 + $0x68] sm:$0xff]
          %v652 = vld [vmem:[#allocation2 + $0x70] sm:$0xff]
          %v653 = vld [vmem:[#allocation2 + $0x78] sm:$0xff]
          %v654 = vld [vmem:[#allocation2 + $0x80] sm:$0xff]
          %v655 = vld [vmem:[#allocation2 + $0x88] sm:$0xff]
          %v656 = vld [vmem:[#allocation2 + $0x90] sm:$0xff]
          %v657 = vld [vmem:[#allocation2 + $0x98] sm:$0xff]
          %v658 = vld [vmem:[#allocation2 + $0xa0] sm:$0xff]
          %v659 = vld [vmem:[#allocation2 + $0xa8] sm:$0xff]
          %v660 = vld [vmem:[#allocation2 + $0xb0] sm:$0xff]
          %v661 = vld [vmem:[#allocation2 + $0xb8] sm:$0xff]
          %v662 = vld [vmem:[#allocation2 + $0xc0] sm:$0xff]
          %v663 = vld [vmem:[#allocation2 + $0xc8] sm:$0xff]
          %v664 = vld [vmem:[#allocation2 + $0xd0] sm:$0xff]
          %v665 = vld [vmem:[#allocation2 + $0xd8] sm:$0xff]
          %v666 = vld [vmem:[#allocation2 + $0xe0] sm:$0xff]
          %v667 = vld [vmem:[#allocation2 + $0xe8] sm:$0xff]
          %v668 = vld [vmem:[#allocation2 + $0xf0] sm:$0xff]
          %v669 = vld [vmem:[#allocation2 + $0xf8] sm:$0xff]
          %v670 = vld [vmem:[%s2] sm:$0x3]
          %v672 = vlaneseq
          %v673 = vshrl.u32 %v672, 7
          %v674 = vsub.s32 0, %v673
          %v675 = vrot.slane %v670, %v674
          %v676 = vlaneseq
          %v677 = vshrl.u32 %v676, 7
          %v678 = vsub.s32 1, %v677
          %v679 = vrot.slane %v670, %v678
          %v682 = vadd.f32 %v638, %v675
          %v683 = vadd.f32 %v639, %v679
          %v684 = vadd.f32 %v640, %v675
          %v685 = vadd.f32 %v641, %v679
          %v686 = vadd.f32 %v642, %v675
          %v687 = vadd.f32 %v643, %v679
          %v688 = vadd.f32 %v644, %v675
          %v689 = vadd.f32 %v645, %v679
          %v690 = vadd.f32 %v646, %v675
          %v691 = vadd.f32 %v647, %v679
          %v692 = vadd.f32 %v648, %v675
          %v693 = vadd.f32 %v649, %v679
          %v694 = vadd.f32 %v650, %v675
          %v695 = vadd.f32 %v651, %v679
          %v696 = vadd.f32 %v652, %v675
          %v697 = vadd.f32 %v653, %v679
          %v698 = vadd.f32 %v654, %v675
          %v699 = vadd.f32 %v655, %v679
          %v700 = vadd.f32 %v656, %v675
          %v701 = vadd.f32 %v657, %v679
          %v702 = vadd.f32 %v658, %v675
          %v703 = vadd.f32 %v659, %v679
          %v704 = vadd.f32 %v660, %v675
          %v705 = vadd.f32 %v661, %v679
          %v706 = vadd.f32 %v662, %v675
          %v707 = vadd.f32 %v663, %v679
          %v708 = vadd.f32 %v664, %v675
          %v709 = vadd.f32 %v665, %v679
          %v710 = vadd.f32 %v666, %v675
          %v711 = vadd.f32 %v667, %v679
          %v712 = vadd.f32 %v668, %v675
          %v713 = vadd.f32 %v669, %v679
          %v714 = vmax.f32 %v682, 0.0
          %v715 = vmax.f32 %v683, 0.0
          %v716 = vmax.f32 %v684, 0.0
          %v717 = vmax.f32 %v685, 0.0
          %v718 = vmax.f32 %v686, 0.0
          %v719 = vmax.f32 %v687, 0.0
          %v720 = vmax.f32 %v688, 0.0
          %v721 = vmax.f32 %v689, 0.0
          %v722 = vmax.f32 %v690, 0.0
          %v723 = vmax.f32 %v691, 0.0
          %v724 = vmax.f32 %v692, 0.0
          %v725 = vmax.f32 %v693, 0.0
          %v726 = vmax.f32 %v694, 0.0
          %v727 = vmax.f32 %v695, 0.0
          %v728 = vmax.f32 %v696, 0.0
          %v729 = vmax.f32 %v697, 0.0
          %v730 = vmax.f32 %v698, 0.0
          %v731 = vmax.f32 %v699, 0.0
          %v732 = vmax.f32 %v700, 0.0
          %v733 = vmax.f32 %v701, 0.0
          %v734 = vmax.f32 %v702, 0.0
          %v735 = vmax.f32 %v703, 0.0
          %v736 = vmax.f32 %v704, 0.0
          %v737 = vmax.f32 %v705, 0.0
          %v738 = vmax.f32 %v706, 0.0
          %v739 = vmax.f32 %v707, 0.0
          %v740 = vmax.f32 %v708, 0.0
          %v741 = vmax.f32 %v709, 0.0
          %v742 = vmax.f32 %v710, 0.0
          %v743 = vmax.f32 %v711, 0.0
          %v744 = vmax.f32 %v712, 0.0
          %v745 = vmax.f32 %v713, 0.0
          %v746 = vpack.c.bf16 %v716, %v714
          %v747 = vpack.c.bf16 %v717, %v715
          %v748 = vpack.c.bf16 %v720, %v718
          %v749 = vpack.c.bf16 %v721, %v719
          %v750 = vpack.c.bf16 %v724, %v722
          %v751 = vpack.c.bf16 %v725, %v723
          %v752 = vpack.c.bf16 %v728, %v726
          %v753 = vpack.c.bf16 %v729, %v727
          %v754 = vpack.c.bf16 %v732, %v730
          %v755 = vpack.c.bf16 %v733, %v731
          %v756 = vpack.c.bf16 %v736, %v734
          %v757 = vpack.c.bf16 %v737, %v735
          %v758 = vpack.c.bf16 %v740, %v738
          %v759 = vpack.c.bf16 %v741, %v739
          %v760 = vpack.c.bf16 %v744, %v742
          %v761 = vpack.c.bf16 %v745, %v743
          %v778 = vunpack.c.l.b16 %v746
          %v779 = vunpack.c.l.b16 %v747
          %v780 = vunpack.c.h.b16 %v746
          %v781 = vunpack.c.h.b16 %v747
          %v782 = vunpack.c.l.b16 %v748
          %v783 = vunpack.c.l.b16 %v749
          %v784 = vunpack.c.h.b16 %v748
          %v785 = vunpack.c.h.b16 %v749
          %v786 = vunpack.c.l.b16 %v750
          %v787 = vunpack.c.l.b16 %v751
          %v788 = vunpack.c.h.b16 %v750
          %v789 = vunpack.c.h.b16 %v751
          %v790 = vunpack.c.l.b16 %v752
          %v791 = vunpack.c.l.b16 %v753
          %v792 = vunpack.c.h.b16 %v752
          %v793 = vunpack.c.h.b16 %v753
          %v794 = vunpack.c.l.b16 %v754
          %v795 = vunpack.c.l.b16 %v755
          %v796 = vunpack.c.h.b16 %v754
          %v797 = vunpack.c.h.b16 %v755
          %v798 = vunpack.c.l.b16 %v756
          %v799 = vunpack.c.l.b16 %v757
          %v800 = vunpack.c.h.b16 %v756
          %v801 = vunpack.c.h.b16 %v757
          %v802 = vunpack.c.l.b16 %v758
          %v803 = vunpack.c.l.b16 %v759
          %v804 = vunpack.c.h.b16 %v758
          %v805 = vunpack.c.h.b16 %v759
          %v806 = vunpack.c.l.b16 %v760
          %v807 = vunpack.c.l.b16 %v761
          %v808 = vunpack.c.h.b16 %v760
          %v809 = vunpack.c.h.b16 %v761
          %v810 = vpack.c.b16 %v779, %v778
          %v811 = vpack.c.b16 %v781, %v780
          %v812 = vpack.c.b16 %v783, %v782
          %v813 = vpack.c.b16 %v785, %v784
          %v814 = vpack.c.b16 %v787, %v786
          %v815 = vpack.c.b16 %v789, %v788
          %v816 = vpack.c.b16 %v791, %v790
          %v817 = vpack.c.b16 %v793, %v792
          %v818 = vpack.c.b16 %v795, %v794
          %v819 = vpack.c.b16 %v797, %v796
          %v820 = vpack.c.b16 %v799, %v798
          %v821 = vpack.c.b16 %v801, %v800
          %v822 = vpack.c.b16 %v803, %v802
          %v823 = vpack.c.b16 %v805, %v804
          %v824 = vpack.c.b16 %v807, %v806
          %v825 = vpack.c.b16 %v809, %v808
          %842 = vst [vmem:[%s219] sm:$0xff] %v810
          %843 = vst [vmem:[%s219 + $0x8] sm:$0xff] %v811
          %844 = vst [vmem:[%s219 + $0x10] sm:$0xff] %v812
          %845 = vst [vmem:[%s219 + $0x18] sm:$0xff] %v813
          %846 = vst [vmem:[%s219 + $0x20] sm:$0xff] %v814
          %847 = vst [vmem:[%s219 + $0x28] sm:$0xff] %v815
          %848 = vst [vmem:[%s219 + $0x30] sm:$0xff] %v816
          %849 = vst [vmem:[%s219 + $0x38] sm:$0xff] %v817
          %850 = vst [vmem:[%s219 + $0x40] sm:$0xff] %v818
          %851 = vst [vmem:[%s219 + $0x48] sm:$0xff] %v819
          %852 = vst [vmem:[%s219 + $0x50] sm:$0xff] %v820
          %853 = vst [vmem:[%s219 + $0x58] sm:$0xff] %v821
          %854 = vst [vmem:[%s219 + $0x60] sm:$0xff] %v822
          %855 = vst [vmem:[%s219 + $0x68] sm:$0xff] %v823
          %856 = vst [vmem:[%s219 + $0x70] sm:$0xff] %v824
          %857 = vst [vmem:[%s219 + $0x78] sm:$0xff] %v825
        $region48: #{tpu_custom_call.1} parent=31 // pred_fallthru
          _
        %s858 = sand.u32 %s111, 1
        %s859 = scalar_lea.sflag [#allocation5], %s858
        %s860 = sand.u32 %s111, 1
        %s861 = smul.addr %s860, 128
        %s862 = scalar_lea.vmem [#allocation8], %s861
        // Predicated region
        $region49: #{tpu_custom_call.1} parent=31 // pred_check
          %p863 = pneg %p121
        $region50: #{tpu_custom_call.1} parent=31 // pred_check_branch
          %865 = sbr.rel (%p863) target = $region52
        $region51: #{tpu_custom_call.1} parent=31 // pred_region
          %s866 = smul.u32 16, %s25
          %s868 = ssub.s32 2048, 2048
          %869 = vsyncadd %s859, %s868
          %s870 = smul.addr %s866, 2
          %s871 = smul.addr %s870, 64
          %s872 = scalar_lea.hbm %s3, %s871
          %s873 = sshll.u32 %s862, 4
          %s874 = int_to_ptr.vmem [resolvable:$true] %s873
          %879 = dma.vmem_to_hbm [thread:$0]  %s874, 2048, %s872, %s859, 128, 128, 8
        $region52: #{tpu_custom_call.1} parent=31 // pred_fallthru
          _
      $region32: #{tpu_custom_call.1} parent=5 // pred_fallthru
        _
      %p880 = scmp.le.s32.totalorder 2, %s16
      // Predicated region
      $region53: #{tpu_custom_call.1} parent=5 // pred_check
        %p881 = pneg %p880
      $region54: #{tpu_custom_call.1} parent=5 // pred_check_branch
        %883 = sbr.rel (%p881) target = $region56
      $region55: #{tpu_custom_call.1} parent=5 // pred_region
        %s884 = ssub.s32 %s16, 2
        // Predicated region
        $region57: #{tpu_custom_call.1} parent=55 // pred_check
          %p885 = pneg %p127
        $region58: #{tpu_custom_call.1} parent=55 // pred_check_branch
          %887 = sbr.rel (%p885) target = $region60
        $region59: #{tpu_custom_call.1} parent=55 // pred_region
          %s888 = sand.u32 %s112, 1
          %s889 = scalar_lea.sflag [#allocation5], %s888
          %s890 = sand.u32 %s112, 1
          %s891 = smul.addr %s890, 128
          %s892 = scalar_lea.vmem [#allocation8], %s891
          %893 = dma.done %s889, 2048
        $region60: #{tpu_custom_call.1} parent=55 // pred_fallthru
          _
      $region56: #{tpu_custom_call.1} parent=5 // pred_fallthru
        _
    $region6: #{tpu_custom_call.1} parent=1 // loop_footer
      %s20 = sadd.s32 1, %s16
    $region7: #{tpu_custom_call.1} parent=1 // loop_footer_branch
      %15 = sbr.rel target = $region3
    $region8: #{tpu_custom_call.1} parent=1 // loop_exit
      _
    %894 = vsyncpa [#allocation4], 1
    %s895 = scalar_lea.sflag [#allocation4], 1
    %896 = vsyncpa %s895, 1
    %897 = vsyncpa [#allocation7], 1
    %898 = vsyncpa [#allocation5], 1
    %s899 = scalar_lea.sflag [#allocation5], 1
    %900 = vsyncpa %s899, 1

</llo_original>
